<compile_context>
chip_gen: v7x
topology: tpu7x:2x2x1
jax: 0.10.0
libtpu: 0.0.40
codegen_flags: <defaults>
</compile_context>

<pallas_src>
import math
import functools

import jax
import jax.numpy as jnp
from jax.experimental import pallas as pl
from jax.experimental.pallas import tpu as pltpu


def make_positional_encoding(hidden_size: int, max_seq_len: int = 16) -> jnp.ndarray:
    """Deterministic pe buffer, identical to the PyTorch __init__ math."""
    position = jnp.arange(0, max_seq_len, dtype=jnp.float32)[:, None]          # (L, 1)
    div_term = jnp.exp(
        jnp.arange(0, hidden_size, 2, dtype=jnp.float32)
        * (-(math.log(10000.0) / hidden_size))
    )                                                                           # (H/2,)
    pe = jnp.zeros((max_seq_len, hidden_size), dtype=jnp.float32)
    pe = pe.at[:, 0::2].set(jnp.sin(position * div_term))
    pe = pe.at[:, 1::2].set(jnp.cos(position * div_term))
    return pe                                                                   # (L, H)


# ----------------------------------------------------------------------------
# Kernels (operate on the flattened 2-D slab: rows = B, cols = S*H)
# ----------------------------------------------------------------------------

def _pe_add_kernel(x_ref, pe_ref, o_ref):
    # x_ref: (br, bc), pe_ref: (1, bc) -> broadcast add over rows.
    o_ref[...] = (x_ref[...] + pe_ref[...]).astype(o_ref.dtype)


def _pe_add_dropout_kernel(x_ref, pe_ref, bits_ref, o_ref, *, keep_prob: float):
    y = x_ref[...] + pe_ref[...]
    # Integer-threshold compare on raw uint32 bits (inverted dropout).
    threshold = jnp.uint32(min(int(round(keep_prob * (1 << 32))), (1 << 32) - 1))
    keep = bits_ref[...] < threshold
    y = jnp.where(keep, y * (1.0 / keep_prob), jnp.zeros_like(y))
    o_ref[...] = y.astype(o_ref.dtype)


# ----------------------------------------------------------------------------
# Tiling heuristic
# ----------------------------------------------------------------------------

def _pick_tiles(rows: int, cols: int, itemsize: int,
                target_block_bytes: int = 2 << 20):
    """Pick (block_rows, block_cols) satisfying the (8,128) rule and a
    conservative per-block VMEM budget (safe on v5e/v6e/v7x defaults)."""
    # Columns: keep full width when an 8-row stripe fits the budget (keeps pe
    # resident in one block); otherwise split into 128-aligned column tiles.
    block_cols = cols
    if 8 * cols * itemsize > target_block_bytes and cols % 128 == 0:
        block_cols = max(128, (target_block_bytes // (8 * itemsize)) // 128 * 128)
        block_cols = min(block_cols, cols)
        while cols % block_cols != 0:
            block_cols -= 128
    # Rows: biggest multiple of 8 within budget (or full rows when small).
    if rows <= 8 or rows * block_cols * itemsize <= target_block_bytes:
        block_rows = rows
    else:
        block_rows = max(8, (target_block_bytes // (block_cols * itemsize)) // 8 * 8)
        block_rows = min(block_rows, rows)
    return block_rows, block_cols


# ----------------------------------------------------------------------------
# Wrapper
# ----------------------------------------------------------------------------

def positional_encoding_forward(x, pe, *, training: bool = False,
                                p: float = 0.1, rng_key=None):
    """x: (B, S, H);  pe: (max_seq_len, H).  Returns (B, S, H)."""
    B, S, H = x.shape
    rows, cols = B, S * H

    x2 = x.reshape(rows, cols)                       # lane-dense slab
    pe2 = pe[:S, :].reshape(1, cols)                 # pe[:, :x.size(1)], flattened

    br, bc = _pick_tiles(rows, cols, jnp.dtype(x.dtype).itemsize)
    grid = (pl.cdiv(rows, br), pl.cdiv(cols, bc))

    x_spec = pl.BlockSpec((br, bc), lambda i, j: (i, j))
    pe_spec = pl.BlockSpec((1, bc), lambda i, j: (0, j))   # row-index constant -> resident
    out_spec = pl.BlockSpec((br, bc), lambda i, j: (i, j))

    cparams = pltpu.CompilerParams(dimension_semantics=("parallel", "parallel"))

    if (not training) or p <= 0.0:
        out2 = pl.pallas_call(
            _pe_add_kernel,
            out_shape=jax.ShapeDtypeStruct((rows, cols), x.dtype),
            grid=grid,
            in_specs=[x_spec, pe_spec],
            out_specs=out_spec,
            compiler_params=cparams,
        )(x2, pe2)
    else:
        if rng_key is None:
            rng_key = jax.random.PRNGKey(0)
        # TODO(synk): dropout mask is drawn from JAX's RNG, not torch's stream
        # (same distribution / inverted-dropout semantics, not bit-identical).
        bits = jax.random.bits(rng_key, (rows, cols), dtype=jnp.uint32)
        kernel = functools.partial(_pe_add_dropout_kernel, keep_prob=1.0 - p)
        out2 = pl.pallas_call(
            kernel,
            out_shape=jax.ShapeDtypeStruct((rows, cols), x.dtype),
            grid=grid,
            in_specs=[x_spec, pe_spec, x_spec],      # bits tiled like x
            out_specs=out_spec,
            compiler_params=cparams,
        )(x2, pe2, bits)

    return out2.reshape(B, S, H)


# ----------------------------------------------------------------------------
# Demo / self-check
# ----------------------------------------------------------------------------

if __name__ == "__main__":
    key = jax.random.PRNGKey(0)
    B, S, H, MAX_LEN = 2, 8, 32, 16

    x = jax.random.normal(key, (B, S, H), dtype=jnp.float32)
    pe = make_positional_encoding(H, MAX_LEN)

    # Eval-mode forward (dropout = identity), matches module.eval() exactly.
    out_eval = positional_encoding_forward(x, pe, training=False)
    out_eval = jax.block_until_ready(out_eval)

    ref = x + pe[None, :S, :]
    assert jnp.allclose(out_eval, ref, atol=1e-6), "eval mismatch vs reference"

    # Training-mode forward (inverted dropout, p=0.1).
    p = 0.1
    out_train = positional_encoding_forward(
        x, pe, training=True, p=p, rng_key=jax.random.PRNGKey(1234))
    out_train = jax.block_until_ready(out_train)
    assert out_train.shape == (B, S, H)
    # Every element is either 0 (dropped) or (x+pe)/keep_prob (kept).
    scaled = ref / (1.0 - p)
    ok = jnp.logical_or(jnp.isclose(out_train, 0.0, atol=1e-6),
                        jnp.isclose(out_train, scaled, atol=1e-5))
    assert bool(jnp.all(ok)), "training-mode dropout values inconsistent"

    print("KERNEL_OK")
</pallas_src>

<mosaic_0001>
module attributes {stable_mosaic.version = 11 : i64} {
  func.func @_pe_add_kernel(%arg0: i32, %arg1: i32, %arg2: memref<2x256xf32, #tpu.memory_space<vmem>>, %arg3: memref<1x256xf32, #tpu.memory_space<vmem>>, %arg4: memref<2x256xf32, #tpu.memory_space<vmem>>) attributes {dimension_semantics = [#tpu.dimension_semantics<parallel>, #tpu.dimension_semantics<parallel>], iteration_bounds = array<i64: 1, 1>, scalar_prefetch = 0 : i64, scratch_operands = 0 : i64, tpu.core_type = #tpu.core_type<tc>, window_params = [{transform_indices = @transform_0, window_bounds = array<i64: 2, 256>}, {transform_indices = @transform_1, window_bounds = array<i64: 1, 256>}, {transform_indices = @transform_2, window_bounds = array<i64: 2, 256>}]} {
    %c0 = arith.constant 0 : index
    %c0_0 = arith.constant 0 : index
    %0 = vector.load %arg2[%c0, %c0_0] : memref<2x256xf32, #tpu.memory_space<vmem>>, vector<2x256xf32>
    %c0_1 = arith.constant 0 : index
    %c0_2 = arith.constant 0 : index
    %1 = vector.load %arg3[%c0_1, %c0_2] : memref<1x256xf32, #tpu.memory_space<vmem>>, vector<1x256xf32>
    %2 = vector.broadcast %1 : vector<1x256xf32> to vector<2x256xf32>
    %3 = arith.addf %0, %2 : vector<2x256xf32>
    %c0_3 = arith.constant 0 : index
    %c0_4 = arith.constant 0 : index
    %4 = vector.load %arg4[%c0_3, %c0_4] : memref<2x256xf32, #tpu.memory_space<vmem>>, vector<2x256xf32>
    tpu.vector_store %arg4[%c0_3, %c0_4], %3 {strides = array<i32>} : memref<2x256xf32, #tpu.memory_space<vmem>>, vector<2x256xf32>,
    return
  }
  func.func @transform_0(%arg0: i32, %arg1: i32) -> (i32, i32) {
    %c0_i32 = arith.constant 0 : i32
    return %arg0, %arg1 : i32, i32
  }
  func.func @transform_1(%arg0: i32, %arg1: i32) -> (i32, i32) {
    %c0_i32 = arith.constant 0 : i32
    %c0_i32_0 = arith.constant 0 : i32
    return %c0_i32, %arg1 : i32, i32
  }
  func.func @transform_2(%arg0: i32, %arg1: i32) -> (i32, i32) {
    %c0_i32 = arith.constant 0 : i32
    return %arg0, %arg1 : i32, i32
  }
}

</mosaic_0001>

<llo_original>
// kernel: tpu_custom_call.1
$region0: #{tpu_custom_call.1}
  #allocation0 [shape = 'u32[]', space=smem, size = 0x4, offset = 0x4, fixed_abs, tag = 'smem constant byte address 0x4 - core index']
  #allocation1 [shape = 'u32[144,128]{1,0:T(1,128)}', space=vmem, size = 0x12000, scoped, tag = 'internal scratch']
  %s0 = inlined_call_operand.hbm [shape: f32[2,256], index: 0, kind: input, shape index: {}]
  %s1 = inlined_call_operand.vmem [shape: f32[1,256], index: 1, kind: input, shape index: {}]
  %s2 = inlined_call_operand.hbm [shape: f32[2,256], index: 2, kind: output, shape index: {}]
  %s3 = sld [smem:[#allocation0]]
  $region22: #{tpu_custom_call.1} parent=0
    _
  %s5 = ssub.s32 1, %s3
  %s6 = scalar_select 0, %s5, %s3
  $region1: #{tpu_custom_call.1} parent=0
    #allocation2 [shape = 'u8[2048]{0}', space=vmem, size = 0x800, scoped, tag = 'input window, operand 0, single buffered']
    #allocation3 [shape = 's32[1]{0}', space=sflag, size = 0x4, scoped, tag = 'scoped memory for tpu_custom_call.1']
    #allocation4 [shape = 's32[1]{0}', space=sflag, size = 0x4, scoped, tag = 'scoped memory for tpu_custom_call.1']
    #allocation5 [shape = 'u8[2048]{0}', space=vmem, size = 0x800, scoped, tag = 'output window, operand 0, single buffered']
    %7 = vsyncpa [#allocation3], 0
    %8 = vsyncpa [#allocation4], 0
    // Predicated region
    $region2: #{tpu_custom_call.1} parent=1 // pred_check
      _
    $region3: #{tpu_custom_call.1} parent=1 // pred_check_branch
      %10 = sbr.rel (0) target = $region5
    $region4: #{tpu_custom_call.1} parent=1 // pred_region
      %s12 = ssub.s32 64, 64
      %13 = vsyncadd [#allocation3], %s12
      %s15 = sshll.u32 [#allocation2], 4
      %s16 = int_to_ptr.vmem [resolvable:$true] %s15
      %18 = dma.hbm_to_vmem [thread:$0]  %s0, 64, %s16, [#allocation3]
    $region5: #{tpu_custom_call.1} parent=1 // pred_fallthru
      _
    // Predicated region
    $region6: #{tpu_custom_call.1} parent=1 // pred_check
      _
    $region7: #{tpu_custom_call.1} parent=1 // pred_check_branch
      %20 = sbr.rel (0) target = $region9
    $region8: #{tpu_custom_call.1} parent=1 // pred_region
      _
    $region9: #{tpu_custom_call.1} parent=1 // pred_fallthru
      _
    // Predicated region
    $region10: #{tpu_custom_call.1} parent=1 // pred_check
      _
    $region11: #{tpu_custom_call.1} parent=1 // pred_check_branch
      %22 = sbr.rel (0) target = $region13
    $region12: #{tpu_custom_call.1} parent=1 // pred_region
      %23 = dma.done [#allocation3], 64
    $region13: #{tpu_custom_call.1} parent=1 // pred_fallthru
      _
    %v24 = vld [vmem:[#allocation2] sm:$0xf]
    %v25 = vld [vmem:[%s1] sm:$0x3]
    %v27 = vlaneseq
    %v28 = vshrl.u32 %v27, 7
    %v29 = vsub.s32 0, %v28
    %v30 = vrot.slane %v25, %v29
    %v31 = vlaneseq
    %v32 = vshrl.u32 %v31, 7
    %v33 = vsub.s32 1, %v32
    %v34 = vrot.slane %v25, %v33
    %v35 = vcombine.low %v30, %v34
    %v37 = vunpack.c.l.s4 1983009808
    %v38 = vunpack.c.0.s8 %v37
    %v39 = vlaneseq
    %v40 = vshrl.u32 %v39, 7
    %v41 = vsub.s32 %v38, %v40
    %v42 = vrot.slane %v35, %v41
    %v44 = vadd.f32 %v24, %v42
    %45 = vst [vmem:[#allocation5] sm:$0xf] %v44
    // Predicated region
    $region14: #{tpu_custom_call.1} parent=1 // pred_check
      _
    $region15: #{tpu_custom_call.1} parent=1 // pred_check_branch
      %47 = sbr.rel (0) target = $region17
    $region16: #{tpu_custom_call.1} parent=1 // pred_region
      %s49 = ssub.s32 64, 64
      %50 = vsyncadd [#allocation4], %s49
      %s52 = sshll.u32 [#allocation5], 4
      %s53 = int_to_ptr.vmem [resolvable:$true] %s52
      %55 = dma.vmem_to_hbm [thread:$0]  %s53, 64, %s2, [#allocation4]
    $region17: #{tpu_custom_call.1} parent=1 // pred_fallthru
      _
    // Predicated region
    $region18: #{tpu_custom_call.1} parent=1 // pred_check
      _
    $region19: #{tpu_custom_call.1} parent=1 // pred_check_branch
      %57 = sbr.rel (0) target = $region21
    $region20: #{tpu_custom_call.1} parent=1 // pred_region
      %58 = dma.done [#allocation4], 64
    $region21: #{tpu_custom_call.1} parent=1 // pred_fallthru
      _
    %59 = vsyncpa [#allocation3], 1
    %60 = vsyncpa [#allocation4], 1

</llo_original>
